<compile_context>
chip_gen: v5e
topology: v5e:2x2
jax: 0.10.0
libtpu: 0.0.40
codegen_flags: <defaults>
</compile_context>

<pallas_src>
import functools
import math

import jax
import jax.numpy as jnp
from jax.experimental import pallas as pl
from jax.experimental.pallas import tpu as pltpu


def _ffwd_kernel(x_ref, w1_ref, b1_ref, w2_ref, b2_ref, o_ref, acc_ref):
    """One (tm, C) row tile of  out = relu(x @ W1 + b1) @ W2 + b2.

    Grid = (row_tiles, hidden_tiles). The hidden axis is the reduction axis of
    the second matmul; the output block is resident across it and accumulated
    in f32 VMEM scratch (P3 pattern).
    """
    j = pl.program_id(1)

    @pl.when(j == 0)
    def _init():
        # Fold the second bias into the accumulator init.
        acc_ref[...] = jnp.broadcast_to(b2_ref[...], acc_ref.shape)

    # bf16 operands -> MXU, f32 accumulation.
    h = jnp.dot(x_ref[...], w1_ref[...], preferred_element_type=jnp.float32)
    # Bias + ReLU in f32 (keeps the VPU path f32; important on v5e).
    h = jnp.maximum(h + b1_ref[...], 0.0)
    acc_ref[...] += jnp.dot(h.astype(w2_ref.dtype), w2_ref[...],
                            preferred_element_type=jnp.float32)

    @pl.when(j == pl.num_programs(1) - 1)
    def _finalize():
        # TODO(synk): nn.Dropout is identity in eval mode; training-mode dropout
        # would apply a pltpu.prng_seed/prng_random_bits mask + 1/(1-p) rescale here.
        o_ref[...] = acc_ref[...].astype(o_ref.dtype)


@functools.partial(jax.jit, static_argnames=("tm", "th"))
def feedforward(x, w1, b1, w2, b2, *, tm=128, th=512):
    """x: (B, T, C) float32. Returns (B, T, C) float32."""
    B, T, C = x.shape
    H = w1.shape[1]
    out_dtype = x.dtype

    # Hidden-dim tile: stream W1 columns / W2 rows so VMEM use is bounded in H.
    th = min(th, H)
    if H % th != 0:
        th = H  # fall back to a single hidden step for awkward H

    # Pad the row dimension to a multiple of the row tile.
    M = B * T
    Mp = math.ceil(M / tm) * tm

    x2 = x.reshape(M, C).astype(jnp.bfloat16)
    if Mp != M:
        x2 = jnp.pad(x2, ((0, Mp - M), (0, 0)))

    w1b = w1.astype(jnp.bfloat16)
    w2b = w2.astype(jnp.bfloat16)
    b1f = b1.reshape(1, H).astype(jnp.float32)
    b2f = b2.reshape(1, C).astype(jnp.float32)

    grid = (Mp // tm, H // th)

    # Advisory cost estimate so XLA schedules surrounding ops sensibly.
    cost = pl.CostEstimate(
        flops=4 * M * C * H,  # two matmuls, 2*M*C*H each
        transcendentals=0,
        bytes_accessed=(x2.size * 2 + Mp * C * 4
                        + w1b.size * 2 + w2b.size * 2
                        + b1f.size * 4 + b2f.size * 4),
    )

    # Scoped VMEM: double-buffered tiles + f32 accumulator, never below the
    # 32 MiB default, capped well under v7x's 64 MiB physical VMEM.
    vmem_bytes = (2 * tm * C * 2        # x tile (bf16), double-buffered
                  + 2 * C * th * 2      # W1 tile (bf16)
                  + 2 * th * C * 2      # W2 tile (bf16)
                  + 2 * (th + C) * 4    # biases (f32)
                  + 2 * tm * C * 4      # output tile (f32)
                  + tm * C * 4)         # accumulator scratch
    vmem_limit = int(min(max(2 * vmem_bytes, 32 << 20), 48 << 20))

    out = pl.pallas_call(
        _ffwd_kernel,
        out_shape=jax.ShapeDtypeStruct((Mp, C), out_dtype),
        grid_spec=pltpu.PrefetchScalarGridSpec(
            num_scalar_prefetch=0,
            grid=grid,
            in_specs=[
                pl.BlockSpec((tm, C), lambda i, j: (i, 0)),   # x rows (resident over j)
                pl.BlockSpec((C, th), lambda i, j: (0, j)),   # W1 column tile
                pl.BlockSpec((1, th), lambda i, j: (0, j)),   # b1 tile
                pl.BlockSpec((th, C), lambda i, j: (j, 0)),   # W2 row tile
                pl.BlockSpec((1, C), lambda i, j: (0, 0)),    # b2 (resident)
            ],
            out_specs=pl.BlockSpec((tm, C), lambda i, j: (i, 0)),
            scratch_shapes=[pltpu.VMEM((tm, C), jnp.float32)],
        ),
        compiler_params=pltpu.CompilerParams(
            dimension_semantics=("parallel", "arbitrary"),
            vmem_limit_bytes=vmem_limit,
        ),
        cost_estimate=cost,
    )(x2, w1b, b1f, w2b, b2f)

    return out[:M].reshape(B, T, C)


def init_params(key, n_embd):
    """Deterministic synthetic params matching nn.Linear shapes (stored transposed)."""
    hidden = 4 * n_embd
    k1, k2, k3, k4 = jax.random.split(key, 4)
    s1 = 1.0 / jnp.sqrt(n_embd)
    s2 = 1.0 / jnp.sqrt(hidden)
    w1 = jax.random.uniform(k1, (n_embd, hidden), jnp.float32, -s1, s1)
    b1 = jax.random.uniform(k2, (1, hidden), jnp.float32, -s1, s1)
    w2 = jax.random.uniform(k3, (hidden, n_embd), jnp.float32, -s2, s2)
    b2 = jax.random.uniform(k4, (1, n_embd), jnp.float32, -s2, s2)
    return w1, b1, w2, b2


if __name__ == "__main__":
    # Small but lane-friendly shapes: batch=2, seq=128, n_embd=128 (hidden=512).
    # B*T = 256 -> 2 parallel row-tiles (keeps both v7x TensorCores busy),
    # th=256 -> 2 hidden steps (exercises the accumulator path).
    B, T, C = 2, 128, 128
    key = jax.random.PRNGKey(0)
    kx, kp = jax.random.split(key)
    x = jax.random.normal(kx, (B, T, C), dtype=jnp.float32)
    w1, b1, w2, b2 = init_params(kp, C)

    y = feedforward(x, w1, b1, w2, b2, tm=128, th=256)
    y = jax.block_until_ready(y)

    # Reference: same bf16 matmul operands, f32 accumulation / bias / ReLU.
    xb = x.reshape(-1, C).astype(jnp.bfloat16)
    h_ref = jnp.maximum(
        jnp.dot(xb, w1.astype(jnp.bfloat16),
                preferred_element_type=jnp.float32) + b1, 0.0)
    ref = jnp.dot(h_ref.astype(jnp.bfloat16), w2.astype(jnp.bfloat16),
                  preferred_element_type=jnp.float32) + b2

    err = float(jnp.max(jnp.abs(y.reshape(-1, C) - ref)))
    assert jnp.allclose(y.reshape(-1, C), ref, atol=2e-3, rtol=2e-2), err
    print("KERNEL_OK")
</pallas_src>

<mosaic_0001>
module attributes {stable_mosaic.version = 11 : i64} {
  func.func @_ffwd_kernel(%arg0: i32, %arg1: i32, %arg2: memref<128x128xbf16, #tpu.memory_space<vmem>>, %arg3: memref<128x256xbf16, #tpu.memory_space<vmem>>, %arg4: memref<1x256xf32, #tpu.memory_space<vmem>>, %arg5: memref<256x128xbf16, #tpu.memory_space<vmem>>, %arg6: memref<1x128xf32, #tpu.memory_space<vmem>>, %arg7: memref<128x128xf32, #tpu.memory_space<vmem>>, %arg8: memref<128x128xf32, #tpu.memory_space<vmem>>) attributes {dimension_semantics = [#tpu.dimension_semantics<parallel>, #tpu.dimension_semantics<arbitrary>], iteration_bounds = array<i64: 2, 2>, scalar_prefetch = 0 : i64, scratch_operands = 1 : i64, tpu.core_type = #tpu.core_type<tc>, window_params = [{transform_indices = @transform_0, window_bounds = array<i64: 128, 128>}, {transform_indices = @transform_1, window_bounds = array<i64: 128, 256>}, {transform_indices = @transform_2, window_bounds = array<i64: 1, 256>}, {transform_indices = @transform_3, window_bounds = array<i64: 256, 128>}, {pipeline_mode = #tpu.pipeline_mode<synchronous>, transform_indices = @transform_4, window_bounds = array<i64: 1, 128>}, {transform_indices = @transform_5, window_bounds = array<i64: 128, 128>}]} {
    %c0_i32 = arith.constant 0 : i32
    %0 = arith.cmpi eq, %arg1, %c0_i32 : i32
    %1 = arith.extui %0 : i1 to i32
    %c0_i32_0 = arith.constant 0 : i32
    %2 = arith.cmpi ne, %1, %c0_i32_0 : i32
    scf.if %2 {
      %c0_15 = arith.constant 0 : index
      %c0_16 = arith.constant 0 : index
      %20 = vector.load %arg6[%c0_15, %c0_16] : memref<1x128xf32, #tpu.memory_space<vmem>>, vector<1x128xf32>
      %21 = vector.shape_cast %20 : vector<1x128xf32> to vector<1x128xf32>
      %22 = vector.broadcast %21 : vector<1x128xf32> to vector<128x128xf32>
      %c0_17 = arith.constant 0 : index
      %c0_18 = arith.constant 0 : index
      %23 = vector.load %arg8[%c0_17, %c0_18] : memref<128x128xf32, #tpu.memory_space<vmem>>, vector<128x128xf32>
      tpu.vector_store %arg8[%c0_17, %c0_18], %22 {strides = array<i32>} : memref<128x128xf32, #tpu.memory_space<vmem>>, vector<128x128xf32>,
    } else {
    }
    %c0 = arith.constant 0 : index
    %c0_1 = arith.constant 0 : index
    %3 = vector.load %arg2[%c0, %c0_1] : memref<128x128xbf16, #tpu.memory_space<vmem>>, vector<128x128xbf16>
    %c0_2 = arith.constant 0 : index
    %c0_3 = arith.constant 0 : index
    %4 = vector.load %arg3[%c0_2, %c0_3] : memref<128x256xbf16, #tpu.memory_space<vmem>>, vector<128x256xbf16>
    %cst = arith.constant dense<0.000000e+00> : vector<128x256xf32>
    %5 = tpu.matmul %3, %4, %cst {dimension_numbers = #tpu.dot_dimension_numbers<[1], [0], [0], [1], [0, 0, 1, 1], [], []>} : vector<128x128xbf16>, vector<128x256xbf16>, vector<128x256xf32> -> vector<128x256xf32>
    %c0_4 = arith.constant 0 : index
    %c0_5 = arith.constant 0 : index
    %6 = vector.load %arg4[%c0_4, %c0_5] : memref<1x256xf32, #tpu.memory_space<vmem>>, vector<1x256xf32>
    %7 = vector.broadcast %6 : vector<1x256xf32> to vector<128x256xf32>
    %8 = arith.addf %5, %7 : vector<128x256xf32>
    %cst_6 = arith.constant 0.000000e+00 : f32
    %9 = vector.broadcast %cst_6 : f32 to vector<128x256xf32>
    %10 = arith.maximumf %8, %9 : vector<128x256xf32>
    %c0_7 = arith.constant 0 : index
    %c0_8 = arith.constant 0 : index
    %11 = vector.load %arg8[%c0_7, %c0_8] : memref<128x128xf32, #tpu.memory_space<vmem>>, vector<128x128xf32>
    %12 = arith.truncf %10 : vector<128x256xf32> to vector<128x256xbf16>
    %c0_9 = arith.constant 0 : index
    %c0_10 = arith.constant 0 : index
    %13 = vector.load %arg5[%c0_9, %c0_10] : memref<256x128xbf16, #tpu.memory_space<vmem>>, vector<256x128xbf16>
    %cst_11 = arith.constant dense<0.000000e+00> : vector<128x128xf32>
    %14 = tpu.matmul %12, %13, %cst_11 {dimension_numbers = #tpu.dot_dimension_numbers<[1], [0], [0], [1], [0, 0, 1, 1], [], []>} : vector<128x256xbf16>, vector<256x128xbf16>, vector<128x128xf32> -> vector<128x128xf32>
    %15 = arith.addf %11, %14 : vector<128x128xf32>
    %c0_12 = arith.constant 0 : index
    %c0_13 = arith.constant 0 : index
    %16 = vector.load %arg8[%c0_12, %c0_13] : memref<128x128xf32, #tpu.memory_space<vmem>>, vector<128x128xf32>
    tpu.vector_store %arg8[%c0_12, %c0_13], %15 {strides = array<i32>} : memref<128x128xf32, #tpu.memory_space<vmem>>, vector<128x128xf32>,
    %c1_i32 = arith.constant 1 : i32
    %17 = arith.cmpi eq, %arg1, %c1_i32 : i32
    %18 = arith.extui %17 : i1 to i32
    %c0_i32_14 = arith.constant 0 : i32
    %19 = arith.cmpi ne, %18, %c0_i32_14 : i32
    scf.if %19 {
      %c0_15 = arith.constant 0 : index
      %c0_16 = arith.constant 0 : index
      %20 = vector.load %arg8[%c0_15, %c0_16] : memref<128x128xf32, #tpu.memory_space<vmem>>, vector<128x128xf32>
      %c0_17 = arith.constant 0 : index
      %c0_18 = arith.constant 0 : index
      %21 = vector.load %arg7[%c0_17, %c0_18] : memref<128x128xf32, #tpu.memory_space<vmem>>, vector<128x128xf32>
      tpu.vector_store %arg7[%c0_17, %c0_18], %20 {strides = array<i32>} : memref<128x128xf32, #tpu.memory_space<vmem>>, vector<128x128xf32>,
    } else {
    }
    return
  }
  func.func @transform_0(%arg0: i32, %arg1: i32) -> (i32, i32) {
    %c0_i32 = arith.constant 0 : i32
    %c0_i32_0 = arith.constant 0 : i32
    return %arg0, %c0_i32 : i32, i32
  }
  func.func @transform_1(%arg0: i32, %arg1: i32) -> (i32, i32) {
    %c0_i32 = arith.constant 0 : i32
    %c0_i32_0 = arith.constant 0 : i32
    return %c0_i32, %arg1 : i32, i32
  }
  func.func @transform_2(%arg0: i32, %arg1: i32) -> (i32, i32) {
    %c0_i32 = arith.constant 0 : i32
    %c0_i32_0 = arith.constant 0 : i32
    return %c0_i32, %arg1 : i32, i32
  }
  func.func @transform_3(%arg0: i32, %arg1: i32) -> (i32, i32) {
    %c0_i32 = arith.constant 0 : i32
    %c0_i32_0 = arith.constant 0 : i32
    return %arg1, %c0_i32 : i32, i32
  }
  func.func @transform_4(%arg0: i32, %arg1: i32) -> (i32, i32) {
    %c0_i32 = arith.constant 0 : i32
    %c0_i32_0 = arith.constant 0 : i32
    %c0_i32_1 = arith.constant 0 : i32
    return %c0_i32, %c0_i32_0 : i32, i32
  }
  func.func @transform_5(%arg0: i32, %arg1: i32) -> (i32, i32) {
    %c0_i32 = arith.constant 0 : i32
    %c0_i32_0 = arith.constant 0 : i32
    return %arg0, %c0_i32 : i32, i32
  }
}

</mosaic_0001>

<llo_original>
// kernel: feedforward.1
$region0: #{feedforward.1}
  #allocation0 [shape = 'u32[]', space=smem, size = 0x4, offset = 0x4, fixed_abs, tag = 'smem constant byte address 0x4 - core index']
  #allocation1 [shape = 'u32[72,128]{1,0:T(1,128)}', space=vmem, size = 0x9000, scoped, tag = 'internal scratch']
  #allocation2 [shape = 'f32[128,128]{1,0:T(8,128)}', space=vmem, size = 0x10000, scoped, tag = 'scratch operand']
  %s0 = inlined_call_operand.vmem [shape: bf16[256,128], index: 0, kind: input, shape index: {}]
  %s1 = inlined_call_operand.vmem [shape: bf16[128,512], index: 1, kind: input, shape index: {}]
  %s2 = inlined_call_operand.vmem [shape: f32[1,512], index: 2, kind: input, shape index: {}]
  %s3 = inlined_call_operand.vmem [shape: bf16[512,128], index: 3, kind: input, shape index: {}]
  %s4 = inlined_call_operand.vmem [shape: f32[1,128], index: 4, kind: input, shape index: {}]
  %s5 = inlined_call_operand.hbm [shape: f32[256,128], index: 5, kind: output, shape index: {}]
  %s6 = sld [smem:[#allocation0]]
  $region99: #{feedforward.1} parent=0
    _
  %s8 = ssub.s32 1, %s6
  %s9 = scalar_select 0, %s8, %s6
  $region1: #{feedforward.1} parent=0
    #allocation3 [shape = 'u8[131072]{0}', space=vmem, size = 0x20000, scoped, tag = 'input window, operand 1']
    #allocation4 [shape = 'u8[131072]{0}', space=vmem, size = 0x20000, scoped, tag = 'output window, operand 0']
    #allocation5 [shape = 's32[2]{0}', space=sflag, size = 0x8, scoped, tag = 'scoped memory for feedforward.1']
    %10 = vsyncpa [#allocation5], 0
    %s11 = scalar_lea.sflag [#allocation5], 1
    %12 = vsyncpa %s11, 0
    loop: start=0, step=1, limit=6
    $region2: #{feedforward.1} parent=1 // loop_pre_header
      _
    $region3: #{feedforward.1} parent=1 // loop_header
      %s14 = sphi 0, %s18
      %p15 = scmp.ge.s32.totalorder %s14, 6
      %s21 = sphi 0, %s33
      %s22 = sphi 0, %s29
      %s23 = sphi 0, %s21
      %s24 = sphi 0, %s22
      %s25 = sphi 0, %s23
      %s26 = sphi 0, %s24
      %s36 = sphi 0, %s38
      %s39 = sphi 0, %s36
      %s40 = sphi 0, %s39
      %s56 = sphi 0, %s40
      %s62 = sphi 0, %s64
      %s65 = sphi 0, %s62
      %s66 = sphi 0, %s65
      %s82 = sphi 0, %s66
      %s88 = sphi 0, %s90
      %s91 = sphi 0, %s88
      %s92 = sphi 0, %s91
      %s108 = sphi 0, %s92
      %s114 = sphi 0, %s116
      %s117 = sphi 0, %s114
      %s118 = sphi 0, %s117
      %s134 = sphi 0, %s118
      %s138 = sphi 0, %s138
      %s140 = sphi 0, %s138
      %s141 = sphi 0, %s140
      %s155 = sphi 0, %s141
      %s161 = sphi 0, %s163
      %s164 = sphi 0, %s161
      %s165 = sphi 0, %s164
      %s181 = sphi 0, %s165
    $region4: #{feedforward.1} parent=1 // loop_header_branch
      %17 = sbr.rel (%p15) target = $region8
    $region5: #{feedforward.1} parent=1 // loop_body
      %s19 = ssub.s32 %s14, 1
      %s20 = ssub.s32 %s14, 2
      %s27 = sadd.s32 1, %s22
      %p28 = scmp.ge.s32.totalorder %s27, 2
      %s29 = scalar_select %p28, 0, %s27
      %s30 = sadd.s32 1, %s21
      %s31 = scalar_select %p28, %s30, %s21
      %p32 = scmp.ge.s32.totalorder %s31, 2
      %s33 = scalar_select %p32, 0, %s31
      %s34 = ssub.s32 %s21, %s33
      %p35 = scmp.eq.s32.totalorder %s34, 0
      %s37 = sadd.s32 %s36, 1
      %s38 = scalar_select %p35, %s36, %s37
      %p41 = pneg %p35
      %p42 = scmp.eq.s32.totalorder %s14, 3
      %p43 = por %p41, %p42
      %p44 = scmp.ne.s32.totalorder %s36, %s39
      %p45 = scmp.eq.s32.totalorder %s14, 0
      %p46 = por %p44, %p45
      %p47 = scmp.ne.s32.totalorder %s36, %s39
      %p48 = scmp.eq.s32.totalorder %s19, 3
      %p49 = por %p47, %p48
      %p50 = scmp.ne.s32.totalorder %s39, %s40
      %p51 = scmp.eq.s32.totalorder %s19, 0
      %p52 = por %p50, %p51
      %p53 = scmp.ne.s32.totalorder %s39, %s40
      %p54 = scmp.eq.s32.totalorder %s20, 3
      %p55 = por %p53, %p54
      %p57 = scmp.ne.s32.totalorder %s40, %s56
      %p58 = scmp.eq.s32.totalorder %s20, 0
      %p59 = por %p57, %p58
      %s60 = ssub.s32 %s22, %s29
      %p61 = scmp.eq.s32.totalorder %s60, 0
      %s63 = sadd.s32 %s62, 1
      %s64 = scalar_select %p61, %s62, %s63
      %p67 = pneg %p61
      %p68 = scmp.eq.s32.totalorder %s14, 3
      %p69 = por %p67, %p68
      %p70 = scmp.ne.s32.totalorder %s62, %s65
      %p71 = scmp.eq.s32.totalorder %s14, 0
      %p72 = por %p70, %p71
      %p73 = scmp.ne.s32.totalorder %s62, %s65
      %p74 = scmp.eq.s32.totalorder %s19, 3
      %p75 = por %p73, %p74
      %p76 = scmp.ne.s32.totalorder %s65, %s66
      %p77 = scmp.eq.s32.totalorder %s19, 0
      %p78 = por %p76, %p77
      %p79 = scmp.ne.s32.totalorder %s65, %s66
      %p80 = scmp.eq.s32.totalorder %s20, 3
      %p81 = por %p79, %p80
      %p83 = scmp.ne.s32.totalorder %s66, %s82
      %p84 = scmp.eq.s32.totalorder %s20, 0
      %p85 = por %p83, %p84
      %s86 = ssub.s32 %s22, %s29
      %p87 = scmp.eq.s32.totalorder %s86, 0
      %s89 = sadd.s32 %s88, 1
      %s90 = scalar_select %p87, %s88, %s89
      %p93 = pneg %p87
      %p94 = scmp.eq.s32.totalorder %s14, 3
      %p95 = por %p93, %p94
      %p96 = scmp.ne.s32.totalorder %s88, %s91
      %p97 = scmp.eq.s32.totalorder %s14, 0
      %p98 = por %p96, %p97
      %p99 = scmp.ne.s32.totalorder %s88, %s91
      %p100 = scmp.eq.s32.totalorder %s19, 3
      %p101 = por %p99, %p100
      %p102 = scmp.ne.s32.totalorder %s91, %s92
      %p103 = scmp.eq.s32.totalorder %s19, 0
      %p104 = por %p102, %p103
      %p105 = scmp.ne.s32.totalorder %s91, %s92
      %p106 = scmp.eq.s32.totalorder %s20, 3
      %p107 = por %p105, %p106
      %p109 = scmp.ne.s32.totalorder %s92, %s108
      %p110 = scmp.eq.s32.totalorder %s20, 0
      %p111 = por %p109, %p110
      %s112 = ssub.s32 %s22, %s29
      %p113 = scmp.eq.s32.totalorder %s112, 0
      %s115 = sadd.s32 %s114, 1
      %s116 = scalar_select %p113, %s114, %s115
      %p119 = pneg %p113
      %p120 = scmp.eq.s32.totalorder %s14, 3
      %p121 = por %p119, %p120
      %p122 = scmp.ne.s32.totalorder %s114, %s117
      %p123 = scmp.eq.s32.totalorder %s14, 0
      %p124 = por %p122, %p123
      %p125 = scmp.ne.s32.totalorder %s114, %s117
      %p126 = scmp.eq.s32.totalorder %s19, 3
      %p127 = por %p125, %p126
      %p128 = scmp.ne.s32.totalorder %s117, %s118
      %p129 = scmp.eq.s32.totalorder %s19, 0
      %p130 = por %p128, %p129
      %p131 = scmp.ne.s32.totalorder %s117, %s118
      %p132 = scmp.eq.s32.totalorder %s20, 3
      %p133 = por %p131, %p132
      %p135 = scmp.ne.s32.totalorder %s118, %s134
      %p136 = scmp.eq.s32.totalorder %s20, 0
      %p137 = por %p135, %p136
      %s139 = sadd.s32 %s138, 1
      %p142 = scmp.eq.s32.totalorder %s14, 3
      %p143 = scmp.ne.s32.totalorder %s138, %s140
      %p144 = scmp.eq.s32.totalorder %s14, 0
      %p145 = por %p143, %p144
      %p146 = scmp.ne.s32.totalorder %s138, %s140
      %p147 = scmp.eq.s32.totalorder %s19, 3
      %p148 = por %p146, %p147
      %p149 = scmp.ne.s32.totalorder %s140, %s141
      %p150 = scmp.eq.s32.totalorder %s19, 0
      %p151 = por %p149, %p150
      %p152 = scmp.ne.s32.totalorder %s140, %s141
      %p153 = scmp.eq.s32.totalorder %s20, 3
      %p154 = por %p152, %p153
      %p156 = scmp.ne.s32.totalorder %s141, %s155
      %p157 = scmp.eq.s32.totalorder %s20, 0
      %p158 = por %p156, %p157
      %s159 = ssub.s32 %s21, %s33
      %p160 = scmp.eq.s32.totalorder %s159, 0
      %s162 = sadd.s32 %s161, 1
      %s163 = scalar_select %p160, %s161, %s162
      %p166 = pneg %p160
      %p167 = scmp.eq.s32.totalorder %s14, 3
      %p168 = por %p166, %p167
      %p169 = scmp.ne.s32.totalorder %s161, %s164
      %p170 = scmp.eq.s32.totalorder %s14, 0
      %p171 = por %p169, %p170
      %p172 = scmp.ne.s32.totalorder %s161, %s164
      %p173 = scmp.eq.s32.totalorder %s19, 3
      %p174 = por %p172, %p173
      %p175 = scmp.ne.s32.totalorder %s164, %s165
      %p176 = scmp.eq.s32.totalorder %s19, 0
      %p177 = por %p175, %p176
      %p178 = scmp.ne.s32.totalorder %s164, %s165
      %p179 = scmp.eq.s32.totalorder %s20, 3
      %p180 = por %p178, %p179
      %p182 = scmp.ne.s32.totalorder %s165, %s181
      %p183 = scmp.eq.s32.totalorder %s20, 0
      %p184 = por %p182, %p183
      %p185 = scmp.le.s32.totalorder 1, %s14
      %p186 = scmp.lt.s32.totalorder %s14, 5
      %p187 = pnand %p185, %p186
      %p188 = pneg %p187
      // Predicated region
      $region9: #{feedforward.1} parent=5 // pred_check
        _
      $region10: #{feedforward.1} parent=5 // pred_check_branch
        %190 = sbr.rel (%p187) target = $region12
      $region11: #{feedforward.1} parent=5 // pred_region
        %s191 = ssub.s32 %s14, 1
        // Predicated region
        $region13: #{feedforward.1} parent=11 // pred_check
          %p192 = pneg %p151
        $region14: #{feedforward.1} parent=11 // pred_check_branch
          %194 = sbr.rel (%p192) target = $region16
        $region15: #{feedforward.1} parent=11 // pred_region
          _
        $region16: #{feedforward.1} parent=11 // pred_fallthru
          _
      $region12: #{feedforward.1} parent=5 // pred_fallthru
        _
      %p195 = scmp.lt.s32.totalorder %s14, 4
      // Predicated region
      $region17: #{feedforward.1} parent=5 // pred_check
        %p196 = pneg %p195
      $region18: #{feedforward.1} parent=5 // pred_check_branch
        %198 = sbr.rel (%p196) target = $region20
      $region19: #{feedforward.1} parent=5 // pred_region
        // Predicated region
        $region21: #{feedforward.1} parent=19 // pred_check
          %p199 = pneg %p46
        $region22: #{feedforward.1} parent=19 // pred_check_branch
          %201 = sbr.rel (%p199) target = $region24
        $region23: #{feedforward.1} parent=19 // pred_region
          %s202 = smul.u32 16, %s21
          %p203 = scmp.lt.s32.totalorder %s202, 31
          %s204 = scalar_select %p203, %s202, 31
          %s205 = smul.addr %s204, 4
          %s206 = scalar_lea.vmem %s0, %s205
          %s207 = smul.u32 16, %s21
        $region24: #{feedforward.1} parent=19 // pred_fallthru
          _
        // Predicated region
        $region25: #{feedforward.1} parent=19 // pred_check
          %p208 = pneg %p72
        $region26: #{feedforward.1} parent=19 // pred_check_branch
          %210 = sbr.rel (%p208) target = $region28
        $region27: #{feedforward.1} parent=19 // pred_region
          %s211 = sand.u32 %s62, 1
          %s212 = sand.u32 %s62, 1
          %s213 = smul.addr %s212, 128
          %s214 = scalar_lea.vmem [#allocation3], %s213
          %s215 = smul.u32 2, %s22
          %s216 = smul.addr %s215, 4
          %s217 = scalar_lea.vmem %s1, %s216
          // Predicated region
          $region29: #{feedforward.1} parent=27 // pred_check
            _
          $region30: #{feedforward.1} parent=27 // pred_check_branch
            %219 = sbr.rel (0) target = $region32
          $region31: #{feedforward.1} parent=27 // pred_region
            // Predicated region
            $region33: #{feedforward.1} parent=31 // pred_check
              _
            $region34: #{feedforward.1} parent=31 // pred_check_branch
              %221 = sbr.rel (0) target = $region36
            $region35: #{feedforward.1} parent=31 // pred_region
              // Predicated region
              $region48: #{feedforward.1} parent=35 // pred_check
                _
              $region49: #{feedforward.1} parent=35 // pred_check_branch
                %267 = sbr.rel (0) target = $region51
              $region50: #{feedforward.1} parent=35 // pred_region
                loop: start=0, step=1, limit=1
                $region52: #{feedforward.1} parent=50 // loop_pre_header
                  _
                $region53: #{feedforward.1} parent=50 // loop_header
                  %s269 = sphi 0, %s273
                  %p270 = scmp.ge.s32.totalorder %s269, 1
                  %s274 = sphi %s217, %s217
                  %s275 = sphi %s214, %s214
                $region54: #{feedforward.1} parent=50 // loop_header_branch
                  %272 = sbr.rel (%p270) target = $region58
                $region55: #{feedforward.1} parent=50 // loop_body
                  %v276 = vld [vmem:[%s274] sm:$0xff]
                  %277 = vst [vmem:[%s275] sm:$0xff] %v276
                  %v278 = vld [vmem:[%s274 + $0x10] sm:$0xff]
                  %279 = vst [vmem:[%s275 + $0x8] sm:$0xff] %v278
                  %v280 = vld [vmem:[%s274 + $0x20] sm:$0xff]
                  %281 = vst [vmem:[%s275 + $0x10] sm:$0xff] %v280
                  %v282 = vld [vmem:[%s274 + $0x30] sm:$0xff]
                  %283 = vst [vmem:[%s275 + $0x18] sm:$0xff] %v282
                  %v284 = vld [vmem:[%s274 + $0x40] sm:$0xff]
                  %285 = vst [vmem:[%s275 + $0x20] sm:$0xff] %v284
                  %v286 = vld [vmem:[%s274 + $0x50] sm:$0xff]
                  %287 = vst [vmem:[%s275 + $0x28] sm:$0xff] %v286
                  %v288 = vld [vmem:[%s274 + $0x60] sm:$0xff]
                  %289 = vst [vmem:[%s275 + $0x30] sm:$0xff] %v288
                  %v290 = vld [vmem:[%s274 + $0x70] sm:$0xff]
                  %291 = vst [vmem:[%s275 + $0x38] sm:$0xff] %v290
                  %v292 = vld [vmem:[%s274 + $0x80] sm:$0xff]
                  %293 = vst [vmem:[%s275 + $0x40] sm:$0xff] %v292
                  %v294 = vld [vmem:[%s274 + $0x90] sm:$0xff]
                  %295 = vst [vmem:[%s275 + $0x48] sm:$0xff] %v294
                  %v296 = vld [vmem:[%s274 + $0xa0] sm:$0xff]
                  %297 = vst [vmem:[%s275 + $0x50] sm:$0xff] %v296
                  %v298 = vld [vmem:[%s274 + $0xb0] sm:$0xff]
                  %299 = vst [vmem:[%s275 + $0x58] sm:$0xff] %v298
                  %v300 = vld [vmem:[%s274 + $0xc0] sm:$0xff]
                  %301 = vst [vmem:[%s275 + $0x60] sm:$0xff] %v300
                  %v302 = vld [vmem:[%s274 + $0xd0] sm:$0xff]
                  %303 = vst [vmem:[%s275 + $0x68] sm:$0xff] %v302
                  %v304 = vld [vmem:[%s274 + $0xe0] sm:$0xff]
                  %305 = vst [vmem:[%s275 + $0x70] sm:$0xff] %v304
                  %v306 = vld [vmem:[%s274 + $0xf0] sm:$0xff]
                  %307 = vst [vmem:[%s275 + $0x78] sm:$0xff] %v306
                $region56: #{feedforward.1} parent=50 // loop_footer
                  %s273 = sadd.s32 1, %s269
                $region57: #{feedforward.1} parent=50 // loop_footer_branch
                  %268 = sbr.rel target = $region53
                $region58: #{feedforward.1} parent=50 // loop_exit
                  _
              $region51: #{feedforward.1} parent=35 // pred_fallthru
                _
              // Predicated region
              $region59: #{feedforward.1} parent=35 // pred_check
                _
              $region60: #{feedforward.1} parent=35 // pred_check_branch
                %309 = sbr.rel target = $region62
              $region61: #{feedforward.1} parent=35 // pred_region
                _
              $region62: #{feedforward.1} parent=35 // pred_fallthru
                _
            $region36: #{feedforward.1} parent=31 // pred_fallthru
              _
            // Predicated region
            $region37: #{feedforward.1} parent=31 // pred_check
              _
            $region38: #{feedforward.1} parent=31 // pred_check_branch
              %223 = sbr.rel target = $region40
            $region39: #{feedforward.1} parent=31 // pred_region
              %s225 = ssub.s32 256, 1
              loop: start=0, step=1, limit=1
              $region41: #{feedforward.1} parent=39 // loop_pre_header
                _
              $region42: #{feedforward.1} parent=39 // loop_header
                %s227 = sphi 0, %s231
                %p228 = scmp.ge.s32.totalorder %s227, 1
                %s232 = sphi %s217, %s217
                %s233 = sphi %s214, %s214
              $region43: #{feedforward.1} parent=39 // loop_header_branch
                %230 = sbr.rel (%p228) target = $region47
              $region44: #{feedforward.1} parent=39 // loop_body
                %v234 = vld [vmem:[%s232] sm:%s225]
                %235 = vst [vmem:[%s233] sm:%s225] %v234
                %v236 = vld [vmem:[%s232 + $0x10] sm:%s225]
                %237 = vst [vmem:[%s233 + $0x8] sm:%s225] %v236
                %v238 = vld [vmem:[%s232 + $0x20] sm:%s225]
                %239 = vst [vmem:[%s233 + $0x10] sm:%s225] %v238
                %v240 = vld [vmem:[%s232 + $0x30] sm:%s225]
                %241 = vst [vmem:[%s233 + $0x18] sm:%s225] %v240
                %v242 = vld [vmem:[%s232 + $0x40] sm:%s225]
                %243 = vst [vmem:[%s233 + $0x20] sm:%s225] %v242
                %v244 = vld [vmem:[%s232 + $0x50] sm:%s225]
                %245 = vst [vmem:[%s233 + $0x28] sm:%s225] %v244
                %v246 = vld [vmem:[%s232 + $0x60] sm:%s225]
                %247 = vst [vmem:[%s233 + $0x30] sm:%s225] %v246
                %v248 = vld [vmem:[%s232 + $0x70] sm:%s225]
                %249 = vst [vmem:[%s233 + $0x38] sm:%s225] %v248
                %v250 = vld [vmem:[%s232 + $0x80] sm:%s225]
                %251 = vst [vmem:[%s233 + $0x40] sm:%s225] %v250
                %v252 = vld [vmem:[%s232 + $0x90] sm:%s225]
                %253 = vst [vmem:[%s233 + $0x48] sm:%s225] %v252
                %v254 = vld [vmem:[%s232 + $0xa0] sm:%s225]
                %255 = vst [vmem:[%s233 + $0x50] sm:%s225] %v254
                %v256 = vld [vmem:[%s232 + $0xb0] sm:%s225]
                %257 = vst [vmem:[%s233 + $0x58] sm:%s225] %v256
                %v258 = vld [vmem:[%s232 + $0xc0] sm:%s225]
                %259 = vst [vmem:[%s233 + $0x60] sm:%s225] %v258
                %v260 = vld [vmem:[%s232 + $0xd0] sm:%s225]
                %261 = vst [vmem:[%s233 + $0x68] sm:%s225] %v260
                %v262 = vld [vmem:[%s232 + $0xe0] sm:%s225]
                %263 = vst [vmem:[%s233 + $0x70] sm:%s225] %v262
                %v264 = vld [vmem:[%s232 + $0xf0] sm:%s225]
                %265 = vst [vmem:[%s233 + $0x78] sm:%s225] %v264
              $region45: #{feedforward.1} parent=39 // loop_footer
                %s231 = sadd.s32 1, %s227
              $region46: #{feedforward.1} parent=39 // loop_footer_branch
                %226 = sbr.rel target = $region42
              $region47: #{feedforward.1} parent=39 // loop_exit
                _
            $region40: #{feedforward.1} parent=31 // pred_fallthru
              _
          $region32: #{feedforward.1} parent=27 // pred_fallthru
            _
          %310 = vnop
        $region28: #{feedforward.1} parent=19 // pred_fallthru
          _
        // Predicated region
        $region63: #{feedforward.1} parent=19 // pred_check
          %p311 = pneg %p98
        $region64: #{feedforward.1} parent=19 // pred_check_branch
          %313 = sbr.rel (%p311) target = $region66
        $region65: #{feedforward.1} parent=19 // pred_region
          %s314 = smul.u32 2, %s22
          %p315 = scmp.lt.s32.totalorder %s314, 3
          %s316 = scalar_select %p315, %s314, 3
          %s317 = scalar_lea.vmem %s2, %s316
          %s318 = smul.u32 2, %s22
        $region66: #{feedforward.1} parent=19 // pred_fallthru
          _
        // Predicated region
        $region67: #{feedforward.1} parent=19 // pred_check
          %p319 = pneg %p124
        $region68: #{feedforward.1} parent=19 // pred_check_branch
          %321 = sbr.rel (%p319) target = $region70
        $region69: #{feedforward.1} parent=19 // pred_region
          %s322 = smul.u32 32, %s22
          %p323 = scmp.lt.s32.totalorder %s322, 63
          %s324 = scalar_select %p323, %s322, 63
          %s325 = smul.addr %s324, 4
          %s326 = scalar_lea.vmem %s3, %s325
          %s327 = smul.u32 32, %s22
        $region70: #{feedforward.1} parent=19 // pred_fallthru
          _
      $region20: #{feedforward.1} parent=5 // pred_fallthru
        _
      %p328 = scmp.le.s32.totalorder 1, %s14
      %p329 = scmp.lt.s32.totalorder %s14, 5
      %p330 = pnand %p328, %p329
      %p331 = pneg %p330
      // Predicated region
      $region71: #{feedforward.1} parent=5 // pred_check
        _
      $region72: #{feedforward.1} parent=5 // pred_check_branch
        %333 = sbr.rel (%p330) target = $region74
      $region73: #{feedforward.1} parent=5 // pred_region
        %s334 = ssub.s32 %s14, 1
        %s335 = sand.u32 %s65, 1
        %s336 = sand.u32 %s65, 1
        %s337 = smul.addr %s336, 128
        %s338 = scalar_lea.vmem [#allocation3], %s337
        // Predicated region
        $region75: #{feedforward.1} parent=73 // pred_check
          %p339 = pneg %p78
        $region76: #{feedforward.1} parent=73 // pred_check_branch
          %341 = sbr.rel (%p339) target = $region78
        $region77: #{feedforward.1} parent=73 // pred_region
          _
        $region78: #{feedforward.1} parent=73 // pred_fallthru
          _
        %s342 = smul.u32 16, %s23
        %p343 = scmp.lt.s32.totalorder %s342, 31
        %s344 = scalar_select %p343, %s342, 31
        %s345 = smul.addr %s344, 4
        %s346 = scalar_lea.vmem %s0, %s345
        %p347 = pneg %p52
        %p348 = pneg %p49
        %s349 = sand.u32 %s65, 1
        %s350 = sand.u32 %s65, 1
        %s351 = smul.addr %s350, 128
        %s352 = scalar_lea.vmem [#allocation3], %s351
        %p353 = pneg %p78
        %p354 = pneg %p75
        %s355 = smul.u32 2, %s24
        %p356 = scmp.lt.s32.totalorder %s355, 3
        %s357 = scalar_select %p356, %s355, 3
        %s358 = scalar_lea.vmem %s2, %s357
        %p359 = pneg %p104
        %p360 = pneg %p101
        %s361 = smul.u32 32, %s24
        %p362 = scmp.lt.s32.totalorder %s361, 63
        %s363 = scalar_select %p362, %s361, 63
        %s364 = smul.addr %s363, 4
        %s365 = scalar_lea.vmem %s3, %s364
        %p366 = pneg %p130
        %p367 = pneg %p127
        %p368 = pneg %p151
        %p369 = pneg %p148
        %p370 = pneg %p177
        %p371 = pneg %p174
        %s372 = sand.u32 %s164, 1
        %s373 = scalar_lea.sflag [#allocation5], %s372
        %s374 = sand.u32 %s164, 1
        %s375 = smul.addr %s374, 128
        %s376 = scalar_lea.vmem [#allocation4], %s375
        %s377 = smul.u32 16, %s23
        %p378 = scmp.lt.s32.totalorder %s377, 31
        %s379 = scalar_select %p378, %s377, 31
        %s380 = smul.addr %s379, 4
        %s381 = scalar_lea.vmem %s0, %s380
        %s382 = smul.u32 16, %s23
        %s383 = smul.u32 2, %s24
        %s384 = smul.u32 2, %s24
        %p385 = scmp.lt.s32.totalorder %s384, 3
        %s386 = scalar_select %p385, %s384, 3
        %s387 = scalar_lea.vmem %s2, %s386
        %s388 = smul.u32 2, %s24
        %s389 = smul.u32 32, %s24
        %p390 = scmp.lt.s32.totalorder %s389, 63
        %s391 = scalar_select %p390, %s389, 63
        %s392 = smul.addr %s391, 4
        %s393 = scalar_lea.vmem %s3, %s392
        %s394 = smul.u32 32, %s24
        %s395 = smul.u32 16, %s23
        %p396 = scmp.eq.s32.totalorder %s24, 0
        // Predicated region
        $region79: #{feedforward.1} parent=73 // pred_check
          %p397 = pneg %p396
        $region80: #{feedforward.1} parent=73 // pred_check_branch
          %399 = sbr.rel (%p397) target = $region82
        $region81: #{feedforward.1} parent=73 // pred_region
          %v400 = vld [vmem:[%s4] sm:$0x1]
          %v402 = vperm.slane %v400, 0
          %404 = vst [vmem:[#allocation2] sm:$0xff] %v402
          %405 = vst [vmem:[#allocation2 + $0x8] sm:$0xff] %v402
          %406 = vst [vmem:[#allocation2 + $0x10] sm:$0xff] %v402
          %407 = vst [vmem:[#allocation2 + $0x18] sm:$0xff] %v402
          %408 = vst [vmem:[#allocation2 + $0x20] sm:$0xff] %v402
          %409 = vst [vmem:[#allocation2 + $0x28] sm:$0xff] %v402
          %410 = vst [vmem:[#allocation2 + $0x30] sm:$0xff] %v402
          %411 = vst [vmem:[#allocation2 + $0x38] sm:$0xff] %v402
          %412 = vst [vmem:[#allocation2 + $0x40] sm:$0xff] %v402
          %413 = vst [vmem:[#allocation2 + $0x48] sm:$0xff] %v402
          %414 = vst [vmem:[#allocation2 + $0x50] sm:$0xff] %v402
          %415 = vst [vmem:[#allocation2 + $0x58] sm:$0xff] %v402
          %416 = vst [vmem:[#allocation2 + $0x60] sm:$0xff] %v402
          %417 = vst [vmem:[#allocation2 + $0x68] sm:$0xff] %v402
          %418 = vst [vmem:[#allocation2 + $0x70] sm:$0xff] %v402
          %419 = vst [vmem:[#allocation2 + $0x78] sm:$0xff] %v402
        $region82: #{feedforward.1} parent=73 // pred_fallthru
          _
        %v420 = vld [vmem:[%s381] sm:$0xf]
        %v421 = vld [vmem:[%s381 + $0x4] sm:$0xf]
        %v422 = vld [vmem:[%s381 + $0x8] sm:$0xf]
        %v423 = vld [vmem:[%s381 + $0xc] sm:$0xf]
        %v424 = vld [vmem:[%s381 + $0x10] sm:$0xf]
        %v425 = vld [vmem:[%s381 + $0x14] sm:$0xf]
        %v426 = vld [vmem:[%s381 + $0x18] sm:$0xf]
        %v427 = vld [vmem:[%s381 + $0x1c] sm:$0xf]
        %v428 = vld [vmem:[%s381 + $0x20] sm:$0xf]
        %v429 = vld [vmem:[%s381 + $0x24] sm:$0xf]
        %v430 = vld [vmem:[%s381 + $0x28] sm:$0xf]
        %v431 = vld [vmem:[%s381 + $0x2c] sm:$0xf]
        %v432 = vld [vmem:[%s381 + $0x30] sm:$0xf]
        %v433 = vld [vmem:[%s381 + $0x34] sm:$0xf]
        %v434 = vld [vmem:[%s381 + $0x38] sm:$0xf]
        %v435 = vld [vmem:[%s381 + $0x3c] sm:$0xf]
        %v436 = vld [vmem:[%s338] sm:$0xff]
        %v437 = vld [vmem:[%s338 + $0x8] sm:$0xff]
        %v438 = vld [vmem:[%s338 + $0x10] sm:$0xff]
        %v439 = vld [vmem:[%s338 + $0x18] sm:$0xff]
        %v440 = vld [vmem:[%s338 + $0x20] sm:$0xff]
        %v441 = vld [vmem:[%s338 + $0x28] sm:$0xff]
        %v442 = vld [vmem:[%s338 + $0x30] sm:$0xff]
        %v443 = vld [vmem:[%s338 + $0x38] sm:$0xff]
        %v444 = vld [vmem:[%s338 + $0x40] sm:$0xff]
        %v445 = vld [vmem:[%s338 + $0x48] sm:$0xff]
        %v446 = vld [vmem:[%s338 + $0x50] sm:$0xff]
        %v447 = vld [vmem:[%s338 + $0x58] sm:$0xff]
        %v448 = vld [vmem:[%s338 + $0x60] sm:$0xff]
        %v449 = vld [vmem:[%s338 + $0x68] sm:$0xff]
        %v450 = vld [vmem:[%s338 + $0x70] sm:$0xff]
        %v451 = vld [vmem:[%s338 + $0x78] sm:$0xff]
        %v452 = vld [vmem:[%s387] sm:$0x3]
        %v454 = vperm.slane %v452, 0
        %v455 = vperm.slane %v452, 1
        %v474 = vunpack.c.l.b16 %v420
        %v475 = vunpack.c.l.b16 %v421
        %v476 = vunpack.c.l.b16 %v422
        %v477 = vunpack.c.l.b16 %v423
        %v478 = vunpack.c.l.b16 %v424
        %v479 = vunpack.c.l.b16 %v425
        %v480 = vunpack.c.l.b16 %v426
        %v481 = vunpack.c.l.b16 %v427
        %v482 = vunpack.c.l.b16 %v428
        %v483 = vunpack.c.l.b16 %v429
        %v484 = vunpack.c.l.b16 %v430
        %v485 = vunpack.c.l.b16 %v431
        %v486 = vunpack.c.l.b16 %v432
        %v487 = vunpack.c.l.b16 %v433
        %v488 = vunpack.c.l.b16 %v434
        %v489 = vunpack.c.l.b16 %v435
        %v490 = vpack.c.b16 %v475, %v474
        %v491 = vpack.c.b16 %v477, %v476
        %v492 = vpack.c.b16 %v479, %v478
        %v493 = vpack.c.b16 %v481, %v480
        %v494 = vpack.c.b16 %v483, %v482
        %v495 = vpack.c.b16 %v485, %v484
        %v496 = vpack.c.b16 %v487, %v486
        %v497 = vpack.c.b16 %v489, %v488
        %v522 = vunpack.c.l.b16 %v436
        %v523 = vunpack.c.h.b16 %v436
        %v524 = vunpack.c.l.b16 %v437
        %v525 = vunpack.c.h.b16 %v437
        %v526 = vunpack.c.l.b16 %v438
        %v527 = vunpack.c.h.b16 %v438
        %v528 = vunpack.c.l.b16 %v439
        %v529 = vunpack.c.h.b16 %v439
        %v530 = vunpack.c.l.b16 %v440
        %v531 = vunpack.c.h.b16 %v440
        %v532 = vunpack.c.l.b16 %v441
        %v533 = vunpack.c.h.b16 %v441
        %v534 = vunpack.c.l.b16 %v442
        %v535 = vunpack.c.h.b16 %v442
        %v536 = vunpack.c.l.b16 %v443
        %v537 = vunpack.c.h.b16 %v443
        %v538 = vunpack.c.l.b16 %v444
        %v539 = vunpack.c.h.b16 %v444
        %v540 = vunpack.c.l.b16 %v445
        %v541 = vunpack.c.h.b16 %v445
        %v542 = vunpack.c.l.b16 %v446
        %v543 = vunpack.c.h.b16 %v446
        %v544 = vunpack.c.l.b16 %v447
        %v545 = vunpack.c.h.b16 %v447
        %v546 = vunpack.c.l.b16 %v448
        %v547 = vunpack.c.h.b16 %v448
        %v548 = vunpack.c.l.b16 %v449
        %v549 = vunpack.c.h.b16 %v449
        %v550 = vunpack.c.l.b16 %v450
        %v551 = vunpack.c.h.b16 %v450
        %v552 = vunpack.c.l.b16 %v451
        %v553 = vunpack.c.h.b16 %v451
        %v554 = vpack.c.b16 %v524, %v522
        %v555 = vpack.c.b16 %v525, %v523
        %v556 = vpack.c.b16 %v528, %v526
        %v557 = vpack.c.b16 %v529, %v527
        %v558 = vpack.c.b16 %v532, %v530
        %v559 = vpack.c.b16 %v533, %v531
        %v560 = vpack.c.b16 %v536, %v534
        %v561 = vpack.c.b16 %v537, %v535
        %v562 = vpack.c.b16 %v540, %v538
        %v563 = vpack.c.b16 %v541, %v539
        %v564 = vpack.c.b16 %v544, %v542
        %v565 = vpack.c.b16 %v545, %v543
        %v566 = vpack.c.b16 %v548, %v546
        %v567 = vpack.c.b16 %v549, %v547
        %v568 = vpack.c.b16 %v552, %v550
        %v569 = vpack.c.b16 %v553, %v551
        %586 = vmatpush.bf16.msra.mxu0 %v568
        %587 = vmatpush.bf16.msra.mxu0 %v566
        %588 = vmatpush.bf16.msra.mxu0 %v564
        %589 = vmatpush.bf16.msra.mxu0 %v562
        %590 = vmatpush.bf16.msra.mxu0 %v560
        %591 = vmatpush.bf16.msra.mxu0 %v558
        %592 = vmatpush.bf16.msra.mxu0 %v556
        %593 = vmatpush.bf16.msra.mxu0 %v554
        %594 = vmatmul.bf16.gmra.mxu0 %v490
        %v595 = vpop.f32.mrf.mxu0
        %v596 = vadd.f32 %v454, %v595
        %v597 = vpop.f32.mrf.mxu0
        %v598 = vadd.f32 %v454, %v597
        %599 = vmatmul.bf16.gmra.mxu0 %v491
        %v600 = vpop.f32.mrf.mxu0
        %v601 = vadd.f32 %v454, %v600
        %v602 = vpop.f32.mrf.mxu0
        %v603 = vadd.f32 %v454, %v602
        %604 = vmatmul.bf16.gmra.mxu0 %v492
        %v605 = vpop.f32.mrf.mxu0
        %v606 = vadd.f32 %v454, %v605
        %v607 = vpop.f32.mrf.mxu0
        %v608 = vadd.f32 %v454, %v607
        %609 = vmatmul.bf16.gmra.mxu0 %v493
        %v610 = vpop.f32.mrf.mxu0
        %v611 = vadd.f32 %v454, %v610
        %v612 = vpop.f32.mrf.mxu0
        %v613 = vadd.f32 %v454, %v612
        %614 = vmatmul.bf16.gmra.mxu0 %v494
        %v615 = vpop.f32.mrf.mxu0
        %v616 = vadd.f32 %v454, %v615
        %v617 = vpop.f32.mrf.mxu0
        %v618 = vadd.f32 %v454, %v617
        %619 = vmatmul.bf16.gmra.mxu0 %v495
        %v620 = vpop.f32.mrf.mxu0
        %v621 = vadd.f32 %v454, %v620
        %v622 = vpop.f32.mrf.mxu0
        %v623 = vadd.f32 %v454, %v622
        %624 = vmatmul.bf16.gmra.mxu0 %v496
        %v625 = vpop.f32.mrf.mxu0
        %v626 = vadd.f32 %v454, %v625
        %v627 = vpop.f32.mrf.mxu0
        %v628 = vadd.f32 %v454, %v627
        %629 = vmatmul.bf16.gmra.mxu0 %v497
        %v630 = vpop.f32.mrf.mxu0
        %v631 = vadd.f32 %v454, %v630
        %v632 = vpop.f32.mrf.mxu0
        %v633 = vadd.f32 %v454, %v632
        %634 = vdwg.mxu0
        %635 = vmatpush.bf16.msra.mxu0 %v569
        %636 = vmatpush.bf16.msra.mxu0 %v567
        %637 = vmatpush.bf16.msra.mxu0 %v565
        %638 = vmatpush.bf16.msra.mxu0 %v563
        %639 = vmatpush.bf16.msra.mxu0 %v561
        %640 = vmatpush.bf16.msra.mxu0 %v559
        %641 = vmatpush.bf16.msra.mxu0 %v557
        %642 = vmatpush.bf16.msra.mxu0 %v555
        %643 = vmatmul.bf16.gmra.mxu0 %v490
        %v644 = vpop.f32.mrf.mxu0
        %v645 = vadd.f32 %v455, %v644
        %v646 = vpop.f32.mrf.mxu0
        %v647 = vadd.f32 %v455, %v646
        %648 = vmatmul.bf16.gmra.mxu0 %v491
        %v649 = vpop.f32.mrf.mxu0
        %v650 = vadd.f32 %v455, %v649
        %v651 = vpop.f32.mrf.mxu0
        %v652 = vadd.f32 %v455, %v651
        %653 = vmatmul.bf16.gmra.mxu0 %v492
        %v654 = vpop.f32.mrf.mxu0
        %v655 = vadd.f32 %v455, %v654
        %v656 = vpop.f32.mrf.mxu0
        %v657 = vadd.f32 %v455, %v656
        %658 = vmatmul.bf16.gmra.mxu0 %v493
        %v659 = vpop.f32.mrf.mxu0
        %v660 = vadd.f32 %v455, %v659
        %v661 = vpop.f32.mrf.mxu0
        %v662 = vadd.f32 %v455, %v661
        %663 = vmatmul.bf16.gmra.mxu0 %v494
        %v664 = vpop.f32.mrf.mxu0
        %v665 = vadd.f32 %v455, %v664
        %v666 = vpop.f32.mrf.mxu0
        %v667 = vadd.f32 %v455, %v666
        %668 = vmatmul.bf16.gmra.mxu0 %v495
        %v669 = vpop.f32.mrf.mxu0
        %v670 = vadd.f32 %v455, %v669
        %v671 = vpop.f32.mrf.mxu0
        %v672 = vadd.f32 %v455, %v671
        %673 = vmatmul.bf16.gmra.mxu0 %v496
        %v674 = vpop.f32.mrf.mxu0
        %v675 = vadd.f32 %v455, %v674
        %v676 = vpop.f32.mrf.mxu0
        %v677 = vadd.f32 %v455, %v676
        %678 = vmatmul.bf16.gmra.mxu0 %v497
        %v679 = vpop.f32.mrf.mxu0
        %v680 = vadd.f32 %v455, %v679
        %v681 = vpop.f32.mrf.mxu0
        %v682 = vadd.f32 %v455, %v681
        %683 = vdwg.mxu0
        %v684 = vmax.f32 %v596, 0.0
        %v685 = vmax.f32 %v645, 0.0
        %v686 = vmax.f32 %v598, 0.0
        %v687 = vmax.f32 %v647, 0.0
        %v688 = vmax.f32 %v601, 0.0
        %v689 = vmax.f32 %v650, 0.0
        %v690 = vmax.f32 %v603, 0.0
        %v691 = vmax.f32 %v652, 0.0
        %v692 = vmax.f32 %v606, 0.0
        %v693 = vmax.f32 %v655, 0.0
        %v694 = vmax.f32 %v608, 0.0
        %v695 = vmax.f32 %v657, 0.0
        %v696 = vmax.f32 %v611, 0.0
        %v697 = vmax.f32 %v660, 0.0
        %v698 = vmax.f32 %v613, 0.0
        %v699 = vmax.f32 %v662, 0.0
        %v700 = vmax.f32 %v616, 0.0
        %v701 = vmax.f32 %v665, 0.0
        %v702 = vmax.f32 %v618, 0.0
        %v703 = vmax.f32 %v667, 0.0
        %v704 = vmax.f32 %v621, 0.0
        %v705 = vmax.f32 %v670, 0.0
        %v706 = vmax.f32 %v623, 0.0
        %v707 = vmax.f32 %v672, 0.0
        %v708 = vmax.f32 %v626, 0.0
        %v709 = vmax.f32 %v675, 0.0
        %v710 = vmax.f32 %v628, 0.0
        %v711 = vmax.f32 %v677, 0.0
        %v712 = vmax.f32 %v631, 0.0
        %v713 = vmax.f32 %v680, 0.0
        %v714 = vmax.f32 %v633, 0.0
        %v715 = vmax.f32 %v682, 0.0
        %v716 = vld [vmem:[#allocation2] sm:$0xff]
        %v717 = vld [vmem:[#allocation2 + $0x8] sm:$0xff]
        %v718 = vld [vmem:[#allocation2 + $0x10] sm:$0xff]
        %v719 = vld [vmem:[#allocation2 + $0x18] sm:$0xff]
        %v720 = vld [vmem:[#allocation2 + $0x20] sm:$0xff]
        %v721 = vld [vmem:[#allocation2 + $0x28] sm:$0xff]
        %v722 = vld [vmem:[#allocation2 + $0x30] sm:$0xff]
        %v723 = vld [vmem:[#allocation2 + $0x38] sm:$0xff]
        %v724 = vld [vmem:[#allocation2 + $0x40] sm:$0xff]
        %v725 = vld [vmem:[#allocation2 + $0x48] sm:$0xff]
        %v726 = vld [vmem:[#allocation2 + $0x50] sm:$0xff]
        %v727 = vld [vmem:[#allocation2 + $0x58] sm:$0xff]
        %v728 = vld [vmem:[#allocation2 + $0x60] sm:$0xff]
        %v729 = vld [vmem:[#allocation2 + $0x68] sm:$0xff]
        %v730 = vld [vmem:[#allocation2 + $0x70] sm:$0xff]
        %v731 = vld [vmem:[#allocation2 + $0x78] sm:$0xff]
        %v732 = vpack.c.bf16 %v686, %v684
        %v733 = vpack.c.bf16 %v687, %v685
        %v734 = vpack.c.bf16 %v690, %v688
        %v735 = vpack.c.bf16 %v691, %v689
        %v736 = vpack.c.bf16 %v694, %v692
        %v737 = vpack.c.bf16 %v695, %v693
        %v738 = vpack.c.bf16 %v698, %v696
        %v739 = vpack.c.bf16 %v699, %v697
        %v740 = vpack.c.bf16 %v702, %v700
        %v741 = vpack.c.bf16 %v703, %v701
        %v742 = vpack.c.bf16 %v706, %v704
        %v743 = vpack.c.bf16 %v707, %v705
        %v744 = vpack.c.bf16 %v710, %v708
        %v745 = vpack.c.bf16 %v711, %v709
        %v746 = vpack.c.bf16 %v714, %v712
        %v747 = vpack.c.bf16 %v715, %v713
        %v748 = vld [vmem:[%s393] sm:$0xf]
        %v749 = vld [vmem:[%s393 + $0x4] sm:$0xf]
        %v750 = vld [vmem:[%s393 + $0x8] sm:$0xf]
        %v751 = vld [vmem:[%s393 + $0xc] sm:$0xf]
        %v752 = vld [vmem:[%s393 + $0x10] sm:$0xf]
        %v753 = vld [vmem:[%s393 + $0x14] sm:$0xf]
        %v754 = vld [vmem:[%s393 + $0x18] sm:$0xf]
        %v755 = vld [vmem:[%s393 + $0x1c] sm:$0xf]
        %v756 = vld [vmem:[%s393 + $0x20] sm:$0xf]
        %v757 = vld [vmem:[%s393 + $0x24] sm:$0xf]
        %v758 = vld [vmem:[%s393 + $0x28] sm:$0xf]
        %v759 = vld [vmem:[%s393 + $0x2c] sm:$0xf]
        %v760 = vld [vmem:[%s393 + $0x30] sm:$0xf]
        %v761 = vld [vmem:[%s393 + $0x34] sm:$0xf]
        %v762 = vld [vmem:[%s393 + $0x38] sm:$0xf]
        %v763 = vld [vmem:[%s393 + $0x3c] sm:$0xf]
        %v764 = vld [vmem:[%s393 + $0x40] sm:$0xf]
        %v765 = vld [vmem:[%s393 + $0x44] sm:$0xf]
        %v766 = vld [vmem:[%s393 + $0x48] sm:$0xf]
        %v767 = vld [vmem:[%s393 + $0x4c] sm:$0xf]
        %v768 = vld [vmem:[%s393 + $0x50] sm:$0xf]
        %v769 = vld [vmem:[%s393 + $0x54] sm:$0xf]
        %v770 = vld [vmem:[%s393 + $0x58] sm:$0xf]
        %v771 = vld [vmem:[%s393 + $0x5c] sm:$0xf]
        %v772 = vld [vmem:[%s393 + $0x60] sm:$0xf]
        %v773 = vld [vmem:[%s393 + $0x64] sm:$0xf]
        %v774 = vld [vmem:[%s393 + $0x68] sm:$0xf]
        %v775 = vld [vmem:[%s393 + $0x6c] sm:$0xf]
        %v776 = vld [vmem:[%s393 + $0x70] sm:$0xf]
        %v777 = vld [vmem:[%s393 + $0x74] sm:$0xf]
        %v778 = vld [vmem:[%s393 + $0x78] sm:$0xf]
        %v779 = vld [vmem:[%s393 + $0x7c] sm:$0xf]
        %v812 = vunpack.c.l.b16 %v748
        %v813 = vunpack.c.l.b16 %v749
        %v814 = vunpack.c.l.b16 %v750
        %v815 = vunpack.c.l.b16 %v751
        %v816 = vunpack.c.l.b16 %v752
        %v817 = vunpack.c.l.b16 %v753
        %v818 = vunpack.c.l.b16 %v754
        %v819 = vunpack.c.l.b16 %v755
        %v820 = vunpack.c.l.b16 %v756
        %v821 = vunpack.c.l.b16 %v757
        %v822 = vunpack.c.l.b16 %v758
        %v823 = vunpack.c.l.b16 %v759
        %v824 = vunpack.c.l.b16 %v760
        %v825 = vunpack.c.l.b16 %v761
        %v826 = vunpack.c.l.b16 %v762
        %v827 = vunpack.c.l.b16 %v763
        %v828 = vunpack.c.l.b16 %v764
        %v829 = vunpack.c.l.b16 %v765
        %v830 = vunpack.c.l.b16 %v766
        %v831 = vunpack.c.l.b16 %v767
        %v832 = vunpack.c.l.b16 %v768
        %v833 = vunpack.c.l.b16 %v769
        %v834 = vunpack.c.l.b16 %v770
        %v835 = vunpack.c.l.b16 %v771
        %v836 = vunpack.c.l.b16 %v772
        %v837 = vunpack.c.l.b16 %v773
        %v838 = vunpack.c.l.b16 %v774
        %v839 = vunpack.c.l.b16 %v775
        %v840 = vunpack.c.l.b16 %v776
        %v841 = vunpack.c.l.b16 %v777
        %v842 = vunpack.c.l.b16 %v778
        %v843 = vunpack.c.l.b16 %v779
        %v844 = vpack.c.b16 %v813, %v812
        %v845 = vpack.c.b16 %v815, %v814
        %v846 = vpack.c.b16 %v817, %v816
        %v847 = vpack.c.b16 %v819, %v818
        %v848 = vpack.c.b16 %v821, %v820
        %v849 = vpack.c.b16 %v823, %v822
        %v850 = vpack.c.b16 %v825, %v824
        %v851 = vpack.c.b16 %v827, %v826
        %v852 = vpack.c.b16 %v829, %v828
        %v853 = vpack.c.b16 %v831, %v830
        %v854 = vpack.c.b16 %v833, %v832
        %v855 = vpack.c.b16 %v835, %v834
        %v856 = vpack.c.b16 %v837, %v836
        %v857 = vpack.c.b16 %v839, %v838
        %v858 = vpack.c.b16 %v841, %v840
        %v859 = vpack.c.b16 %v843, %v842
        %876 = vmatpush.bf16.msra.mxu0 %v851
        %877 = vmatpush.bf16.msra.mxu0 %v850
        %878 = vmatpush.bf16.msra.mxu0 %v849
        %879 = vmatpush.bf16.msra.mxu0 %v848
        %880 = vmatpush.bf16.msra.mxu0 %v847
        %881 = vmatpush.bf16.msra.mxu0 %v846
        %882 = vmatpush.bf16.msra.mxu0 %v845
        %883 = vmatpush.bf16.msra.mxu0 %v844
        %884 = vmatmul.bf16.gmra.mxu0 %v732
        %v885 = vpop.f32.mrf.mxu0
        %v886 = vadd.f32 0.0, %v885
        %v887 = vpop.f32.mrf.mxu0
        %v888 = vadd.f32 0.0, %v887
        %889 = vmatmul.bf16.gmra.mxu0 %v734
        %v890 = vpop.f32.mrf.mxu0
        %v891 = vadd.f32 0.0, %v890
        %v892 = vpop.f32.mrf.mxu0
        %v893 = vadd.f32 0.0, %v892
        %894 = vmatmul.bf16.gmra.mxu0 %v736
        %v895 = vpop.f32.mrf.mxu0
        %v896 = vadd.f32 0.0, %v895
        %v897 = vpop.f32.mrf.mxu0
        %v898 = vadd.f32 0.0, %v897
        %899 = vmatmul.bf16.gmra.mxu0 %v738
        %v900 = vpop.f32.mrf.mxu0
        %v901 = vadd.f32 0.0, %v900
        %v902 = vpop.f32.mrf.mxu0
        %v903 = vadd.f32 0.0, %v902
        %904 = vmatmul.bf16.gmra.mxu0 %v740
        %v905 = vpop.f32.mrf.mxu0
        %v906 = vadd.f32 0.0, %v905
        %v907 = vpop.f32.mrf.mxu0
        %v908 = vadd.f32 0.0, %v907
        %909 = vmatmul.bf16.gmra.mxu0 %v742
        %v910 = vpop.f32.mrf.mxu0
        %v911 = vadd.f32 0.0, %v910
        %v912 = vpop.f32.mrf.mxu0
        %v913 = vadd.f32 0.0, %v912
        %914 = vmatmul.bf16.gmra.mxu0 %v744
        %v915 = vpop.f32.mrf.mxu0
        %v916 = vadd.f32 0.0, %v915
        %v917 = vpop.f32.mrf.mxu0
        %v918 = vadd.f32 0.0, %v917
        %919 = vmatmul.bf16.gmra.mxu0 %v746
        %v920 = vpop.f32.mrf.mxu0
        %v921 = vadd.f32 0.0, %v920
        %v922 = vpop.f32.mrf.mxu0
        %v923 = vadd.f32 0.0, %v922
        %924 = vdwg.mxu0
        %925 = vmatpush.bf16.msra.mxu0 %v859
        %926 = vmatpush.bf16.msra.mxu0 %v858
        %927 = vmatpush.bf16.msra.mxu0 %v857
        %928 = vmatpush.bf16.msra.mxu0 %v856
        %929 = vmatpush.bf16.msra.mxu0 %v855
        %930 = vmatpush.bf16.msra.mxu0 %v854
        %931 = vmatpush.bf16.msra.mxu0 %v853
        %932 = vmatpush.bf16.msra.mxu0 %v852
        %933 = vmatmul.bf16.gmra.mxu0 %v733
        %v934 = vpop.f32.mrf.mxu0
        %v935 = vadd.f32 %v886, %v934
        %v936 = vpop.f32.mrf.mxu0
        %v937 = vadd.f32 %v888, %v936
        %938 = vmatmul.bf16.gmra.mxu0 %v735
        %v939 = vpop.f32.mrf.mxu0
        %v940 = vadd.f32 %v891, %v939
        %v941 = vpop.f32.mrf.mxu0
        %v942 = vadd.f32 %v893, %v941
        %943 = vmatmul.bf16.gmra.mxu0 %v737
        %v944 = vpop.f32.mrf.mxu0
        %v945 = vadd.f32 %v896, %v944
        %v946 = vpop.f32.mrf.mxu0
        %v947 = vadd.f32 %v898, %v946
        %948 = vmatmul.bf16.gmra.mxu0 %v739
        %v949 = vpop.f32.mrf.mxu0
        %v950 = vadd.f32 %v901, %v949
        %v951 = vpop.f32.mrf.mxu0
        %v952 = vadd.f32 %v903, %v951
        %953 = vmatmul.bf16.gmra.mxu0 %v741
        %v954 = vpop.f32.mrf.mxu0
        %v955 = vadd.f32 %v906, %v954
        %v956 = vpop.f32.mrf.mxu0
        %v957 = vadd.f32 %v908, %v956
        %958 = vmatmul.bf16.gmra.mxu0 %v743
        %v959 = vpop.f32.mrf.mxu0
        %v960 = vadd.f32 %v911, %v959
        %v961 = vpop.f32.mrf.mxu0
        %v962 = vadd.f32 %v913, %v961
        %963 = vmatmul.bf16.gmra.mxu0 %v745
        %v964 = vpop.f32.mrf.mxu0
        %v965 = vadd.f32 %v916, %v964
        %v966 = vpop.f32.mrf.mxu0
        %v967 = vadd.f32 %v918, %v966
        %968 = vmatmul.bf16.gmra.mxu0 %v747
        %v969 = vpop.f32.mrf.mxu0
        %v970 = vadd.f32 %v921, %v969
        %v971 = vpop.f32.mrf.mxu0
        %v972 = vadd.f32 %v923, %v971
        %973 = vdwg.mxu0
        %v974 = vadd.f32 %v716, %v935
        %v975 = vadd.f32 %v717, %v937
        %v976 = vadd.f32 %v718, %v940
        %v977 = vadd.f32 %v719, %v942
        %v978 = vadd.f32 %v720, %v945
        %v979 = vadd.f32 %v721, %v947
        %v980 = vadd.f32 %v722, %v950
        %v981 = vadd.f32 %v723, %v952
        %v982 = vadd.f32 %v724, %v955
        %v983 = vadd.f32 %v725, %v957
        %v984 = vadd.f32 %v726, %v960
        %v985 = vadd.f32 %v727, %v962
        %v986 = vadd.f32 %v728, %v965
        %v987 = vadd.f32 %v729, %v967
        %v988 = vadd.f32 %v730, %v970
        %v989 = vadd.f32 %v731, %v972
        %990 = vst [vmem:[#allocation2] sm:$0xff] %v974
        %991 = vst [vmem:[#allocation2 + $0x8] sm:$0xff] %v975
        %992 = vst [vmem:[#allocation2 + $0x10] sm:$0xff] %v976
        %993 = vst [vmem:[#allocation2 + $0x18] sm:$0xff] %v977
        %994 = vst [vmem:[#allocation2 + $0x20] sm:$0xff] %v978
        %995 = vst [vmem:[#allocation2 + $0x28] sm:$0xff] %v979
        %996 = vst [vmem:[#allocation2 + $0x30] sm:$0xff] %v980
        %997 = vst [vmem:[#allocation2 + $0x38] sm:$0xff] %v981
        %998 = vst [vmem:[#allocation2 + $0x40] sm:$0xff] %v982
        %999 = vst [vmem:[#allocation2 + $0x48] sm:$0xff] %v983
        %1000 = vst [vmem:[#allocation2 + $0x50] sm:$0xff] %v984
        %1001 = vst [vmem:[#allocation2 + $0x58] sm:$0xff] %v985
        %1002 = vst [vmem:[#allocation2 + $0x60] sm:$0xff] %v986
        %1003 = vst [vmem:[#allocation2 + $0x68] sm:$0xff] %v987
        %1004 = vst [vmem:[#allocation2 + $0x70] sm:$0xff] %v988
        %1005 = vst [vmem:[#allocation2 + $0x78] sm:$0xff] %v989
        %p1006 = scmp.eq.s32.totalorder %s24, 1
        // Predicated region
        $region83: #{feedforward.1} parent=73 // pred_check
          %p1007 = pneg %p1006
        $region84: #{feedforward.1} parent=73 // pred_check_branch
          %1009 = sbr.rel (%p1007) target = $region86
        $region85: #{feedforward.1} parent=73 // pred_region
          %v1010 = vld [vmem:[#allocation2] sm:$0xff]
          %v1011 = vld [vmem:[#allocation2 + $0x8] sm:$0xff]
          %v1012 = vld [vmem:[#allocation2 + $0x10] sm:$0xff]
          %v1013 = vld [vmem:[#allocation2 + $0x18] sm:$0xff]
          %v1014 = vld [vmem:[#allocation2 + $0x20] sm:$0xff]
          %v1015 = vld [vmem:[#allocation2 + $0x28] sm:$0xff]
          %v1016 = vld [vmem:[#allocation2 + $0x30] sm:$0xff]
          %v1017 = vld [vmem:[#allocation2 + $0x38] sm:$0xff]
          %v1018 = vld [vmem:[#allocation2 + $0x40] sm:$0xff]
          %v1019 = vld [vmem:[#allocation2 + $0x48] sm:$0xff]
          %v1020 = vld [vmem:[#allocation2 + $0x50] sm:$0xff]
          %v1021 = vld [vmem:[#allocation2 + $0x58] sm:$0xff]
          %v1022 = vld [vmem:[#allocation2 + $0x60] sm:$0xff]
          %v1023 = vld [vmem:[#allocation2 + $0x68] sm:$0xff]
          %v1024 = vld [vmem:[#allocation2 + $0x70] sm:$0xff]
          %v1025 = vld [vmem:[#allocation2 + $0x78] sm:$0xff]
          %1026 = vst [vmem:[%s376] sm:$0xff] %v1010
          %1027 = vst [vmem:[%s376 + $0x8] sm:$0xff] %v1011
          %1028 = vst [vmem:[%s376 + $0x10] sm:$0xff] %v1012
          %1029 = vst [vmem:[%s376 + $0x18] sm:$0xff] %v1013
          %1030 = vst [vmem:[%s376 + $0x20] sm:$0xff] %v1014
          %1031 = vst [vmem:[%s376 + $0x28] sm:$0xff] %v1015
          %1032 = vst [vmem:[%s376 + $0x30] sm:$0xff] %v1016
          %1033 = vst [vmem:[%s376 + $0x38] sm:$0xff] %v1017
          %1034 = vst [vmem:[%s376 + $0x40] sm:$0xff] %v1018
          %1035 = vst [vmem:[%s376 + $0x48] sm:$0xff] %v1019
          %1036 = vst [vmem:[%s376 + $0x50] sm:$0xff] %v1020
          %1037 = vst [vmem:[%s376 + $0x58] sm:$0xff] %v1021
          %1038 = vst [vmem:[%s376 + $0x60] sm:$0xff] %v1022
          %1039 = vst [vmem:[%s376 + $0x68] sm:$0xff] %v1023
          %1040 = vst [vmem:[%s376 + $0x70] sm:$0xff] %v1024
          %1041 = vst [vmem:[%s376 + $0x78] sm:$0xff] %v1025
        $region86: #{feedforward.1} parent=73 // pred_fallthru
          _
        %s1042 = sand.u32 %s164, 1
        %s1043 = scalar_lea.sflag [#allocation5], %s1042
        %s1044 = sand.u32 %s164, 1
        %s1045 = smul.addr %s1044, 128
        %s1046 = scalar_lea.vmem [#allocation4], %s1045
        // Predicated region
        $region87: #{feedforward.1} parent=73 // pred_check
          %p1047 = pneg %p174
        $region88: #{feedforward.1} parent=73 // pred_check_branch
          %1049 = sbr.rel (%p1047) target = $region90
        $region89: #{feedforward.1} parent=73 // pred_region
          %s1050 = smul.u32 16, %s23
          %1052 = vsyncadd %s1043, 0
          %s1053 = smul.addr %s1050, 8
          %s1054 = scalar_lea.hbm %s5, %s1053
          %s1055 = sshll.u32 %s1046, 4
          %s1056 = int_to_ptr.vmem [resolvable:$true] %s1055
          %s1057 = sshll.u32 %s1054, 4
          %s1058 = int_to_ptr.hbm [resolvable:$true] %s1057
          %1063 = dma.vmem_to_hbm [thread:$0]  %s1056, 2048, %s1058, %s1043, 128, 128, 8
        $region90: #{feedforward.1} parent=73 // pred_fallthru
          _
      $region74: #{feedforward.1} parent=5 // pred_fallthru
        _
      %p1064 = scmp.le.s32.totalorder 2, %s14
      // Predicated region
      $region91: #{feedforward.1} parent=5 // pred_check
        %p1065 = pneg %p1064
      $region92: #{feedforward.1} parent=5 // pred_check_branch
        %1067 = sbr.rel (%p1065) target = $region94
      $region93: #{feedforward.1} parent=5 // pred_region
        %s1068 = ssub.s32 %s14, 2
        // Predicated region
        $region95: #{feedforward.1} parent=93 // pred_check
          %p1069 = pneg %p180
        $region96: #{feedforward.1} parent=93 // pred_check_branch
          %1071 = sbr.rel (%p1069) target = $region98
        $region97: #{feedforward.1} parent=93 // pred_region
          %s1072 = sand.u32 %s165, 1
          %s1073 = scalar_lea.sflag [#allocation5], %s1072
          %s1074 = sand.u32 %s165, 1
          %s1075 = smul.addr %s1074, 128
          %s1076 = scalar_lea.vmem [#allocation4], %s1075
          %1078 = dma.done %s1073, 2048
        $region98: #{feedforward.1} parent=93 // pred_fallthru
          _
      $region94: #{feedforward.1} parent=5 // pred_fallthru
        _
    $region6: #{feedforward.1} parent=1 // loop_footer
      %s18 = sadd.s32 1, %s14
    $region7: #{feedforward.1} parent=1 // loop_footer_branch
      %13 = sbr.rel target = $region3
    $region8: #{feedforward.1} parent=1 // loop_exit
      _
    %1079 = vsyncpa [#allocation5], 1
    %s1080 = scalar_lea.sflag [#allocation5], 1
    %1081 = vsyncpa %s1080, 1

</llo_original>
